<compile_context>
chip_gen: v7x
topology: tpu7x:2x2x1
jax: 0.10.0
libtpu: 0.0.40
codegen_flags: <defaults>
</compile_context>

<pallas_src>
import math
import functools

import numpy as np
import jax
import jax.numpy as jnp
from jax.experimental import pallas as pl
from jax.experimental.pallas import tpu as pltpu

_LANE = 128
_MAX_LANE_TILE = 4096  # divisor-aligned cap for the lane tile


def _affine_kernel(alpha_ref, beta_ref, x_ref, o_ref):
    # out = alpha * x + beta ; alpha/beta are f32 and broadcast over either the
    # lane axis (shape (tr, 1)) or the sublane axis (shape (1, tl)).
    x = x_ref[...].astype(jnp.float32)
    o_ref[...] = (alpha_ref[...] * x + beta_ref[...]).astype(o_ref.dtype)


def _vmem_budget():
    """Per-generation (block-byte-target, vmem_limit_bytes)."""
    vmem_cap = None
    try:
        info = pltpu.get_tpu_info()
        vmem_cap = int(getattr(info, "vmem_capacity_bytes", 0)) or None
    except Exception:
        vmem_cap = None
    if vmem_cap is None:
        vmem_cap = 64 * 1024 * 1024  # conservative assumption (v7x-sized)
    if vmem_cap <= 64 * 1024 * 1024:
        # v7x-class: 64 MiB per TC, ~3.2 TB/s HBM -> bigger blocks amortize the
        # ~0.35 us per-grid-step cost. 4 x 6 MiB (double-buffered in+out) = 24 MiB.
        return 6 * 1024 * 1024, 40 * 1024 * 1024
    # v5e / v6e: 128 MiB physical VMEM. Raise the scoped limit explicitly so the
    # same 4 MiB blocks also clear v5e's 16 MiB scoped default.
    return 4 * 1024 * 1024, 48 * 1024 * 1024


def _pick_tiles(R, L, itemsize, target_bytes):
    """(row_tile, lane_tile) obeying (sublane, 128) rules, ~target_bytes/block."""
    sub = max(8, 32 // itemsize)  # sublane packing: 8 f32, 16 bf16, 32 int8/fp8

    # Lane tile: whole lane axis when modest, else the largest 128-multiple
    # divisor (keeps every block fully lane-dense / unmasked).
    if L <= 2 * _MAX_LANE_TILE:
        tl = L
    else:
        tl = 0
        for cand in range(_MAX_LANE_TILE, 0, -_LANE):
            if L % cand == 0:
                tl = cand
                break
        if tl == 0:
            tl = _MAX_LANE_TILE  # no good divisor: ragged (masked) last block

    # Row tile: aim for ~target_bytes per block.
    target_elems = max(1, target_bytes // itemsize)
    tr = target_elems // max(tl, 1)
    if tr >= R or R <= sub:
        tr = R
    else:
        tr = max(sub, (tr // sub) * sub)
        if tr >= R:
            tr = R

    # Guarantee >= 2 grid blocks when possible (v7x has 2 TensorCores to feed).
    if tr >= R and tl >= L:
        half_r = (R // 2 // sub) * sub
        if half_r >= sub:
            tr = half_r
        else:
            half_l = (L // 2 // _LANE) * _LANE
            if half_l >= _LANE:
                tl = half_l
    return tr, tl


def _affine2d(x2d, alpha_p, beta_p, param_is_col):
    """out[r, l] = alpha * x2d[r, l] + beta with alpha/beta broadcast from a
    column ((R,1), param_is_col=True) or a row ((1,L), param_is_col=False)."""
    R, L = x2d.shape
    itemsize = jnp.dtype(x2d.dtype).itemsize
    target_bytes, vmem_limit = _vmem_budget()
    tr, tl = _pick_tiles(R, L, itemsize, target_bytes)
    grid = (pl.cdiv(R, tr), pl.cdiv(L, tl))

    if param_is_col:
        pspec = pl.BlockSpec((tr, 1), lambda i, j: (i, 0))
    else:
        pspec = pl.BlockSpec((1, tl), lambda i, j: (0, j))
    dspec = pl.BlockSpec((tr, tl), lambda i, j: (i, j))

    nbytes = 2 * R * L * itemsize + (alpha_p.size + beta_p.size) * 4
    cost = pl.CostEstimate(flops=2 * R * L, transcendentals=0,
                           bytes_accessed=nbytes)

    return pl.pallas_call(
        _affine_kernel,
        grid=grid,
        in_specs=[pspec, pspec, dspec],
        out_specs=dspec,
        out_shape=jax.ShapeDtypeStruct((R, L), x2d.dtype),
        compiler_params=pltpu.CompilerParams(
            dimension_semantics=("parallel", "parallel"),
            vmem_limit_bytes=vmem_limit),
        cost_estimate=cost,
    )(alpha_p, beta_p, x2d)


def my_norm2d(x_nchw, alpha1, alpha2, beta, *, delta=0.01, training=True):
    """Pallas implementation of My_norm2d.forward.

    x_nchw : (N, C, H, W), any float dtype (output keeps this dtype)
    alpha1, alpha2, beta : (1, C, 1, 1)
    Returns (out (N,C,H,W), new_alpha1 (1,C,1,1)).
    """
    N, C, H, W = x_nchw.shape
    HW = H * W

    a1 = alpha1.reshape(C).astype(jnp.float32)
    a2 = alpha2.reshape(C).astype(jnp.float32)
    b = beta.reshape(C).astype(jnp.float32)

    # Tiny (C-element) scale math stays in plain JAX.
    if training:
        alpha = (1.0 - float(delta)) * a1 + float(delta) * a2
    else:
        alpha = a1
    # TODO(synk): PyTorch mutates self.alpha1.data in place; here the updated
    # alpha1 is returned functionally as a second output.
    new_alpha1 = alpha.reshape(1, C, 1, 1).astype(alpha1.dtype)

    use_row_layout = (HW % _LANE == 0) and (HW >= 512)
    if use_row_layout:
        # Lane-dense already: (N*C, H*W) with per-row params.
        R, L = N * C, HW
        x2d = x_nchw.reshape(R, L)
        alpha_p = jnp.tile(alpha.reshape(C, 1), (N, 1))  # (N*C, 1)
        beta_p = jnp.tile(b.reshape(C, 1), (N, 1))       # (N*C, 1)
        param_is_col = True
    else:
        # Fold channels into the lane axis: (N, C*H*W) with a (1, C*H*W) param
        # row, broadcast over sublanes in-kernel.
        R, L = N, C * HW
        x2d = x_nchw.reshape(R, L)
        alpha_p = jnp.repeat(alpha, HW).reshape(1, L)
        beta_p = jnp.repeat(b, HW).reshape(1, L)
        param_is_col = False

    out = _affine2d(x2d, alpha_p, beta_p, param_is_col).reshape(N, C, H, W)
    return out, new_alpha1


def _ref_forward(x, alpha1, alpha2, beta, delta, training):
    x64 = np.asarray(x, dtype=np.float32)
    a1 = np.asarray(alpha1, dtype=np.float32)
    a2 = np.asarray(alpha2, dtype=np.float32)
    b = np.asarray(beta, dtype=np.float32)
    if training:
        alpha = (1.0 - delta) * a1 + delta * a2
    else:
        alpha = a1
    return alpha * x64 + b, alpha


if __name__ == "__main__":
    delta = 0.01
    key = jax.random.PRNGKey(0)
    k1, k2, k3, k4, k5 = jax.random.split(key, 5)

    # ---- Test 1: f32, small spatial (lane-fold layout), training + eval ----
    N, C, H, W = 2, 4, 16, 16
    # Module init would be alpha = 0.5 - 1/sqrt(C); use random per-channel
    # params instead so channel-ordering bugs can't cancel out.
    alpha1 = jax.random.normal(k1, (1, C, 1, 1), dtype=jnp.float32)
    alpha2 = jax.random.normal(k2, (1, C, 1, 1), dtype=jnp.float32)
    beta = jax.random.normal(k3, (1, C, 1, 1), dtype=jnp.float32)
    x = jax.random.normal(k4, (N, C, H, W), dtype=jnp.float32)

    out, new_a1 = my_norm2d(x, alpha1, alpha2, beta, delta=delta, training=True)
    out = jax.block_until_ready(out)
    new_a1 = jax.block_until_ready(new_a1)
    out_ref, alpha_ref = _ref_forward(x, alpha1, alpha2, beta, delta, True)
    np.testing.assert_allclose(np.asarray(out), out_ref, rtol=1e-5, atol=1e-5)
    np.testing.assert_allclose(np.asarray(new_a1).reshape(-1),
                               alpha_ref.reshape(-1), rtol=1e-6, atol=1e-6)

    out_e, a1_e = my_norm2d(x, alpha1, alpha2, beta, delta=delta, training=False)
    out_e = jax.block_until_ready(out_e)
    out_eref, _ = _ref_forward(x, alpha1, alpha2, beta, delta, False)
    np.testing.assert_allclose(np.asarray(out_e), out_eref, rtol=1e-5, atol=1e-5)
    np.testing.assert_allclose(np.asarray(a1_e), np.asarray(alpha1),
                               rtol=1e-6, atol=1e-6)

    # ---- Test 2: f32, larger spatial (per-row layout, H*W = 1024) ----
    N2, C2, H2, W2 = 2, 4, 32, 32
    x2 = jax.random.normal(k5, (N2, C2, H2, W2), dtype=jnp.float32)
    out2, _ = my_norm2d(x2, alpha1, alpha2, beta, delta=delta, training=True)
    out2 = jax.block_until_ready(out2)
    out2_ref, _ = _ref_forward(x2, alpha1, alpha2, beta, delta, True)
    np.testing.assert_allclose(np.asarray(out2), out2_ref, rtol=1e-5, atol=1e-5)

    # ---- Test 3: bf16 input stays bf16 end-to-end (in-kernel f32 FMA) ----
    x_bf = x.astype(jnp.bfloat16)
    out_bf, _ = my_norm2d(x_bf, alpha1, alpha2, beta, delta=delta, training=True)
    out_bf = jax.block_until_ready(out_bf)
    assert out_bf.dtype == jnp.bfloat16
    ref_bf, _ = _ref_forward(np.asarray(x_bf, dtype=np.float32),
                             alpha1, alpha2, beta, delta, True)
    np.testing.assert_allclose(np.asarray(out_bf, dtype=np.float32), ref_bf,
                               rtol=2e-2, atol=2e-2)

    print("KERNEL_OK")
</pallas_src>

<mosaic_0001>
module attributes {stable_mosaic.version = 11 : i64} {
  func.func @_affine_kernel(%arg0: i32, %arg1: i32, %arg2: memref<1x512xf32, #tpu.memory_space<vmem>>, %arg3: memref<1x512xf32, #tpu.memory_space<vmem>>, %arg4: memref<2x512xf32, #tpu.memory_space<vmem>>, %arg5: memref<2x512xf32, #tpu.memory_space<vmem>>) attributes {dimension_semantics = [#tpu.dimension_semantics<parallel>, #tpu.dimension_semantics<parallel>], iteration_bounds = array<i64: 1, 2>, scalar_prefetch = 0 : i64, scratch_operands = 0 : i64, tpu.core_type = #tpu.core_type<tc>, window_params = [{transform_indices = @transform_0, window_bounds = array<i64: 1, 512>}, {transform_indices = @transform_1, window_bounds = array<i64: 1, 512>}, {transform_indices = @transform_2, window_bounds = array<i64: 2, 512>}, {transform_indices = @transform_3, window_bounds = array<i64: 2, 512>}]} {
    %c0 = arith.constant 0 : index
    %c0_0 = arith.constant 0 : index
    %0 = vector.load %arg4[%c0, %c0_0] : memref<2x512xf32, #tpu.memory_space<vmem>>, vector<2x512xf32>
    %c0_1 = arith.constant 0 : index
    %c0_2 = arith.constant 0 : index
    %1 = vector.load %arg2[%c0_1, %c0_2] : memref<1x512xf32, #tpu.memory_space<vmem>>, vector<1x512xf32>
    %2 = vector.broadcast %1 : vector<1x512xf32> to vector<2x512xf32>
    %3 = arith.mulf %2, %0 : vector<2x512xf32>
    %c0_3 = arith.constant 0 : index
    %c0_4 = arith.constant 0 : index
    %4 = vector.load %arg3[%c0_3, %c0_4] : memref<1x512xf32, #tpu.memory_space<vmem>>, vector<1x512xf32>
    %5 = vector.broadcast %4 : vector<1x512xf32> to vector<2x512xf32>
    %6 = arith.addf %3, %5 : vector<2x512xf32>
    %c0_5 = arith.constant 0 : index
    %c0_6 = arith.constant 0 : index
    %7 = vector.load %arg5[%c0_5, %c0_6] : memref<2x512xf32, #tpu.memory_space<vmem>>, vector<2x512xf32>
    tpu.vector_store %arg5[%c0_5, %c0_6], %6 {strides = array<i32>} : memref<2x512xf32, #tpu.memory_space<vmem>>, vector<2x512xf32>,
    return
  }
  func.func @transform_0(%arg0: i32, %arg1: i32) -> (i32, i32) {
    %c0_i32 = arith.constant 0 : i32
    %c0_i32_0 = arith.constant 0 : i32
    return %c0_i32, %arg1 : i32, i32
  }
  func.func @transform_1(%arg0: i32, %arg1: i32) -> (i32, i32) {
    %c0_i32 = arith.constant 0 : i32
    %c0_i32_0 = arith.constant 0 : i32
    return %c0_i32, %arg1 : i32, i32
  }
  func.func @transform_2(%arg0: i32, %arg1: i32) -> (i32, i32) {
    %c0_i32 = arith.constant 0 : i32
    return %arg0, %arg1 : i32, i32
  }
  func.func @transform_3(%arg0: i32, %arg1: i32) -> (i32, i32) {
    %c0_i32 = arith.constant 0 : i32
    return %arg0, %arg1 : i32, i32
  }
}

</mosaic_0001>

<llo_original>
// kernel: tpu_custom_call.1
$region0: #{tpu_custom_call.1}
  #allocation0 [shape = 'u32[]', space=smem, size = 0x4, offset = 0x4, fixed_abs, tag = 'smem constant byte address 0x4 - core index']
  #allocation1 [shape = 'u32[144,128]{1,0:T(1,128)}', space=vmem, size = 0x12000, scoped, tag = 'internal scratch']
  %s0 = inlined_call_operand.hbm [shape: f32[1,1024], index: 0, kind: input, shape index: {}]
  %s1 = inlined_call_operand.hbm [shape: f32[1,1024], index: 1, kind: input, shape index: {}]
  %s2 = inlined_call_operand.hbm [shape: f32[2,1024], index: 2, kind: input, shape index: {}]
  %s3 = inlined_call_operand.hbm [shape: f32[2,1024], index: 3, kind: output, shape index: {}]
  %s4 = sld [smem:[#allocation0]]
  $region57: #{tpu_custom_call.1} parent=0
    _
  %s6 = ssub.s32 1, %s4
  %s7 = scalar_select 0, %s6, %s4
  $region1: #{tpu_custom_call.1} parent=0
    #allocation2 [shape = 'u8[4096]{0}', space=vmem, size = 0x1000, scoped, tag = 'input window, operand 0']
    #allocation3 [shape = 's32[2]{0}', space=sflag, size = 0x8, scoped, tag = 'scoped memory for tpu_custom_call.1']
    #allocation4 [shape = 's32[2]{0}', space=sflag, size = 0x8, scoped, tag = 'scoped memory for tpu_custom_call.1']
    #allocation5 [shape = 'u8[4096]{0}', space=vmem, size = 0x1000, scoped, tag = 'input window, operand 1']
    #allocation6 [shape = 's32[2]{0}', space=sflag, size = 0x8, scoped, tag = 'scoped memory for tpu_custom_call.1']
    #allocation7 [shape = 'u8[8192]{0}', space=vmem, size = 0x2000, scoped, tag = 'input window, operand 2']
    #allocation8 [shape = 'u8[8192]{0}', space=vmem, size = 0x2000, scoped, tag = 'output window, operand 0']
    %8 = vsyncpa [#allocation3], 0
    %s9 = scalar_lea.sflag [#allocation3], 1
    %10 = vsyncpa %s9, 0
    %11 = vsyncpa [#allocation6], 0
    %s12 = scalar_lea.sflag [#allocation6], 1
    %13 = vsyncpa %s12, 0
    %14 = vsyncpa [#allocation4], 0
    %s15 = scalar_lea.sflag [#allocation4], 1
    %16 = vsyncpa %s15, 0
    loop: start=0, step=1, limit=4
    $region2: #{tpu_custom_call.1} parent=1 // loop_pre_header
      _
    $region3: #{tpu_custom_call.1} parent=1 // loop_header
      %s18 = sphi 0, %s22
      %p19 = scmp.ge.s32.totalorder %s18, 4
      %s25 = sphi 0, %s37
      %s26 = sphi 0, %s33
      %s27 = sphi 0, %s25
      %s28 = sphi 0, %s26
      %s29 = sphi 0, %s27
      %s30 = sphi 0, %s28
      %s40 = sphi 0, %s42
      %s43 = sphi 0, %s40
      %s44 = sphi 0, %s43
      %s60 = sphi 0, %s44
      %s66 = sphi 0, %s68
      %s69 = sphi 0, %s66
      %s70 = sphi 0, %s69
      %s86 = sphi 0, %s70
      %s94 = sphi 0, %s96
      %s97 = sphi 0, %s94
      %s98 = sphi 0, %s97
      %s114 = sphi 0, %s98
      %s122 = sphi 0, %s124
      %s125 = sphi 0, %s122
      %s126 = sphi 0, %s125
      %s142 = sphi 0, %s126
    $region4: #{tpu_custom_call.1} parent=1 // loop_header_branch
      %21 = sbr.rel (%p19) target = $region8
    $region5: #{tpu_custom_call.1} parent=1 // loop_body
      %s23 = ssub.s32 %s18, 1
      %s24 = ssub.s32 %s18, 2
      %s31 = sadd.s32 1, %s26
      %p32 = scmp.ge.s32.totalorder %s31, 2
      %s33 = scalar_select %p32, 0, %s31
      %s34 = sadd.s32 1, %s25
      %s35 = scalar_select %p32, %s34, %s25
      %p36 = scmp.ge.s32.totalorder %s35, 1
      %s37 = scalar_select %p36, 0, %s35
      %s38 = ssub.s32 %s26, %s33
      %p39 = scmp.eq.s32.totalorder %s38, 0
      %s41 = sadd.s32 %s40, 1
      %s42 = scalar_select %p39, %s40, %s41
      %p45 = pneg %p39
      %p46 = scmp.eq.s32.totalorder %s18, 1
      %p47 = por %p45, %p46
      %p48 = scmp.ne.s32.totalorder %s40, %s43
      %p49 = scmp.eq.s32.totalorder %s18, 0
      %p50 = por %p48, %p49
      %p51 = scmp.ne.s32.totalorder %s40, %s43
      %p52 = scmp.eq.s32.totalorder %s23, 1
      %p53 = por %p51, %p52
      %p54 = scmp.ne.s32.totalorder %s43, %s44
      %p55 = scmp.eq.s32.totalorder %s23, 0
      %p56 = por %p54, %p55
      %p57 = scmp.ne.s32.totalorder %s43, %s44
      %p58 = scmp.eq.s32.totalorder %s24, 1
      %p59 = por %p57, %p58
      %p61 = scmp.ne.s32.totalorder %s44, %s60
      %p62 = scmp.eq.s32.totalorder %s24, 0
      %p63 = por %p61, %p62
      %s64 = ssub.s32 %s26, %s33
      %p65 = scmp.eq.s32.totalorder %s64, 0
      %s67 = sadd.s32 %s66, 1
      %s68 = scalar_select %p65, %s66, %s67
      %p71 = pneg %p65
      %p72 = scmp.eq.s32.totalorder %s18, 1
      %p73 = por %p71, %p72
      %p74 = scmp.ne.s32.totalorder %s66, %s69
      %p75 = scmp.eq.s32.totalorder %s18, 0
      %p76 = por %p74, %p75
      %p77 = scmp.ne.s32.totalorder %s66, %s69
      %p78 = scmp.eq.s32.totalorder %s23, 1
      %p79 = por %p77, %p78
      %p80 = scmp.ne.s32.totalorder %s69, %s70
      %p81 = scmp.eq.s32.totalorder %s23, 0
      %p82 = por %p80, %p81
      %p83 = scmp.ne.s32.totalorder %s69, %s70
      %p84 = scmp.eq.s32.totalorder %s24, 1
      %p85 = por %p83, %p84
      %p87 = scmp.ne.s32.totalorder %s70, %s86
      %p88 = scmp.eq.s32.totalorder %s24, 0
      %p89 = por %p87, %p88
      %s90 = ssub.s32 %s25, %s37
      %s91 = ssub.s32 %s26, %s33
      %s92 = sor.u32 %s90, %s91
      %p93 = scmp.eq.s32.totalorder %s92, 0
      %s95 = sadd.s32 %s94, 1
      %s96 = scalar_select %p93, %s94, %s95
      %p99 = pneg %p93
      %p100 = scmp.eq.s32.totalorder %s18, 1
      %p101 = por %p99, %p100
      %p102 = scmp.ne.s32.totalorder %s94, %s97
      %p103 = scmp.eq.s32.totalorder %s18, 0
      %p104 = por %p102, %p103
      %p105 = scmp.ne.s32.totalorder %s94, %s97
      %p106 = scmp.eq.s32.totalorder %s23, 1
      %p107 = por %p105, %p106
      %p108 = scmp.ne.s32.totalorder %s97, %s98
      %p109 = scmp.eq.s32.totalorder %s23, 0
      %p110 = por %p108, %p109
      %p111 = scmp.ne.s32.totalorder %s97, %s98
      %p112 = scmp.eq.s32.totalorder %s24, 1
      %p113 = por %p111, %p112
      %p115 = scmp.ne.s32.totalorder %s98, %s114
      %p116 = scmp.eq.s32.totalorder %s24, 0
      %p117 = por %p115, %p116
      %s118 = ssub.s32 %s25, %s37
      %s119 = ssub.s32 %s26, %s33
      %s120 = sor.u32 %s118, %s119
      %p121 = scmp.eq.s32.totalorder %s120, 0
      %s123 = sadd.s32 %s122, 1
      %s124 = scalar_select %p121, %s122, %s123
      %p127 = pneg %p121
      %p128 = scmp.eq.s32.totalorder %s18, 1
      %p129 = por %p127, %p128
      %p130 = scmp.ne.s32.totalorder %s122, %s125
      %p131 = scmp.eq.s32.totalorder %s18, 0
      %p132 = por %p130, %p131
      %p133 = scmp.ne.s32.totalorder %s122, %s125
      %p134 = scmp.eq.s32.totalorder %s23, 1
      %p135 = por %p133, %p134
      %p136 = scmp.ne.s32.totalorder %s125, %s126
      %p137 = scmp.eq.s32.totalorder %s23, 0
      %p138 = por %p136, %p137
      %p139 = scmp.ne.s32.totalorder %s125, %s126
      %p140 = scmp.eq.s32.totalorder %s24, 1
      %p141 = por %p139, %p140
      %p143 = scmp.ne.s32.totalorder %s126, %s142
      %p144 = scmp.eq.s32.totalorder %s24, 0
      %p145 = por %p143, %p144
      %p146 = scmp.le.s32.totalorder 1, %s18
      %p147 = scmp.lt.s32.totalorder %s18, 3
      %p148 = pnand %p146, %p147
      %p149 = pneg %p148
      // Predicated region
      $region9: #{tpu_custom_call.1} parent=5 // pred_check
        _
      $region10: #{tpu_custom_call.1} parent=5 // pred_check_branch
        %151 = sbr.rel (%p148) target = $region12
      $region11: #{tpu_custom_call.1} parent=5 // pred_region
        %s152 = ssub.s32 %s18, 1
      $region12: #{tpu_custom_call.1} parent=5 // pred_fallthru
        _
      %p153 = scmp.lt.s32.totalorder %s18, 2
      // Predicated region
      $region13: #{tpu_custom_call.1} parent=5 // pred_check
        %p154 = pneg %p153
      $region14: #{tpu_custom_call.1} parent=5 // pred_check_branch
        %156 = sbr.rel (%p154) target = $region16
      $region15: #{tpu_custom_call.1} parent=5 // pred_region
        // Predicated region
        $region17: #{tpu_custom_call.1} parent=15 // pred_check
          %p157 = pneg %p50
        $region18: #{tpu_custom_call.1} parent=15 // pred_check_branch
          %159 = sbr.rel (%p157) target = $region20
        $region19: #{tpu_custom_call.1} parent=15 // pred_region
          %s160 = sand.u32 %s40, 1
          %s161 = scalar_lea.sflag [#allocation3], %s160
          %s162 = sand.u32 %s40, 1
          %s163 = smul.addr %s162, 4
          %s164 = scalar_lea.vmem [#allocation2], %s163
          %s165 = smul.u32 4, %s26
          %s167 = ssub.s32 64, 64
          %168 = vsyncadd %s161, %s167
          %s169 = smul.addr %s165, 16
          %s170 = scalar_lea.hbm %s0, %s169
          %s172 = sshll.u32 %s164, 4
          %s173 = int_to_ptr.vmem [resolvable:$true] %s172
          %175 = dma.hbm_to_vmem [thread:$0]  %s170, 64, %s173, %s161
        $region20: #{tpu_custom_call.1} parent=15 // pred_fallthru
          _
        // Predicated region
        $region21: #{tpu_custom_call.1} parent=15 // pred_check
          %p176 = pneg %p76
        $region22: #{tpu_custom_call.1} parent=15 // pred_check_branch
          %178 = sbr.rel (%p176) target = $region24
        $region23: #{tpu_custom_call.1} parent=15 // pred_region
          %s179 = sand.u32 %s18, 1
          %s180 = scalar_lea.sflag [#allocation6], %s179
          %s181 = sand.u32 %s66, 1
          %s182 = smul.addr %s181, 4
          %s183 = scalar_lea.vmem [#allocation5], %s182
          %s184 = smul.u32 4, %s26
          %s186 = ssub.s32 64, 64
          %187 = vsyncadd %s180, %s186
          %s188 = smul.addr %s184, 16
          %s189 = scalar_lea.hbm %s1, %s188
          %s191 = sshll.u32 %s183, 4
          %s192 = int_to_ptr.vmem [resolvable:$true] %s191
          %194 = dma.hbm_to_vmem [thread:$0]  %s189, 64, %s192, %s180
        $region24: #{tpu_custom_call.1} parent=15 // pred_fallthru
          _
        // Predicated region
        $region25: #{tpu_custom_call.1} parent=15 // pred_check
          %p195 = pneg %p104
        $region26: #{tpu_custom_call.1} parent=15 // pred_check_branch
          %197 = sbr.rel (%p195) target = $region28
        $region27: #{tpu_custom_call.1} parent=15 // pred_region
          %s198 = sand.u32 %s18, 1
          %s199 = scalar_lea.sflag [#allocation6], %s198
          %s200 = sand.u32 %s94, 1
          %s201 = smul.addr %s200, 8
          %s202 = scalar_lea.vmem [#allocation7], %s201
          %s203 = smul.u32 4, %s26
          %s205 = ssub.s32 128, 128
          %206 = vsyncadd %s199, %s205
          %s207 = smul.addr %s25, 8
          %s208 = sadd.s32 %s203, %s207
          %s209 = smul.addr %s208, 32
          %s210 = scalar_lea.hbm %s2, %s209
          %s212 = sshll.u32 %s202, 4
          %s213 = int_to_ptr.vmem [resolvable:$true] %s212
          %215 = dma.hbm_to_vmem [thread:$0]  %s210, 128, %s213, %s199
        $region28: #{tpu_custom_call.1} parent=15 // pred_fallthru
          _
      $region16: #{tpu_custom_call.1} parent=5 // pred_fallthru
        _
      %p216 = scmp.le.s32.totalorder 1, %s18
      %p217 = scmp.lt.s32.totalorder %s18, 3
      %p218 = pnand %p216, %p217
      %p219 = pneg %p218
      // Predicated region
      $region29: #{tpu_custom_call.1} parent=5 // pred_check
        _
      $region30: #{tpu_custom_call.1} parent=5 // pred_check_branch
        %221 = sbr.rel (%p218) target = $region32
      $region31: #{tpu_custom_call.1} parent=5 // pred_region
        %s222 = ssub.s32 %s18, 1
        %s223 = sand.u32 %s43, 1
        %s224 = scalar_lea.sflag [#allocation3], %s223
        %s225 = sand.u32 %s43, 1
        %s226 = smul.addr %s225, 4
        %s227 = scalar_lea.vmem [#allocation2], %s226
        // Predicated region
        $region33: #{tpu_custom_call.1} parent=31 // pred_check
          %p228 = pneg %p56
        $region34: #{tpu_custom_call.1} parent=31 // pred_check_branch
          %230 = sbr.rel (%p228) target = $region36
        $region35: #{tpu_custom_call.1} parent=31 // pred_region
          %231 = dma.done %s224, 64
        $region36: #{tpu_custom_call.1} parent=31 // pred_fallthru
          _
        %s232 = sand.u32 %s23, 1
        %s233 = scalar_lea.sflag [#allocation6], %s232
        %s234 = sand.u32 %s69, 1
        %s235 = smul.addr %s234, 4
        %s236 = scalar_lea.vmem [#allocation5], %s235
        // Predicated region
        $region37: #{tpu_custom_call.1} parent=31 // pred_check
          %p237 = pneg %p82
        $region38: #{tpu_custom_call.1} parent=31 // pred_check_branch
          %239 = sbr.rel (%p237) target = $region40
        $region39: #{tpu_custom_call.1} parent=31 // pred_region
          %240 = dma.done %s233, 64
        $region40: #{tpu_custom_call.1} parent=31 // pred_fallthru
          _
        %s241 = sand.u32 %s23, 1
        %s242 = scalar_lea.sflag [#allocation6], %s241
        %s243 = sand.u32 %s97, 1
        %s244 = smul.addr %s243, 8
        %s245 = scalar_lea.vmem [#allocation7], %s244
        // Predicated region
        $region41: #{tpu_custom_call.1} parent=31 // pred_check
          %p246 = pneg %p110
        $region42: #{tpu_custom_call.1} parent=31 // pred_check_branch
          %248 = sbr.rel (%p246) target = $region44
        $region43: #{tpu_custom_call.1} parent=31 // pred_region
          %249 = dma.done %s242, 128
        $region44: #{tpu_custom_call.1} parent=31 // pred_fallthru
          _
        %s250 = sand.u32 %s43, 1
        %s251 = scalar_lea.sflag [#allocation3], %s250
        %s252 = sand.u32 %s43, 1
        %s253 = smul.addr %s252, 4
        %s254 = scalar_lea.vmem [#allocation2], %s253
        %p255 = pneg %p56
        %p256 = pneg %p53
        %s257 = sand.u32 %s23, 1
        %s258 = scalar_lea.sflag [#allocation6], %s257
        %s259 = sand.u32 %s69, 1
        %s260 = smul.addr %s259, 4
        %s261 = scalar_lea.vmem [#allocation5], %s260
        %p262 = pneg %p82
        %p263 = pneg %p79
        %s264 = sand.u32 %s23, 1
        %s265 = scalar_lea.sflag [#allocation6], %s264
        %s266 = sand.u32 %s97, 1
        %s267 = smul.addr %s266, 8
        %s268 = scalar_lea.vmem [#allocation7], %s267
        %p269 = pneg %p110
        %p270 = pneg %p107
        %p271 = pneg %p138
        %p272 = pneg %p135
        %s273 = sand.u32 %s125, 1
        %s274 = scalar_lea.sflag [#allocation4], %s273
        %s275 = sand.u32 %s125, 1
        %s276 = smul.addr %s275, 8
        %s277 = scalar_lea.vmem [#allocation8], %s276
        %s278 = smul.u32 4, %s28
        %s279 = smul.u32 4, %s28
        %s280 = smul.u32 4, %s28
        %s281 = smul.u32 4, %s28
        %v282 = vld [vmem:[%s245] sm:$0xff]
        %v283 = vld [vmem:[%s227] sm:$0xf]
        %v285 = vlaneseq
        %v286 = vshrl.u32 %v285, 7
        %v287 = vsub.s32 0, %v286
        %v288 = vrot.slane %v283, %v287
        %v289 = vlaneseq
        %v290 = vshrl.u32 %v289, 7
        %v291 = vsub.s32 1, %v290
        %v292 = vrot.slane %v283, %v291
        %v293 = vlaneseq
        %v294 = vshrl.u32 %v293, 7
        %v295 = vsub.s32 2, %v294
        %v296 = vrot.slane %v283, %v295
        %v297 = vlaneseq
        %v298 = vshrl.u32 %v297, 7
        %v299 = vsub.s32 3, %v298
        %v300 = vrot.slane %v283, %v299
        %v306 = vcombine.high %v282, %v282
        %v308 = vunpack.c.l.s4 1983009808
        %v309 = vunpack.c.0.s8 %v308
        %v310 = vlaneseq
        %v311 = vshrl.u32 %v310, 7
        %v312 = vsub.s32 %v309, %v311
        %v313 = vrot.slane %v282, %v312
        %v315 = vunpack.c.l.s4 1983009808
        %v316 = vunpack.c.0.s8 %v315
        %v317 = vlaneseq
        %v318 = vshrl.u32 %v317, 7
        %v319 = vsub.s32 %v316, %v318
        %v320 = vrot.slane %v306, %v319
        %v321 = vcombine.high %v313, %v313
        %v322 = vcombine.high %v320, %v320
        %v327 = vmul.f32 %v288, %v313
        %v328 = vmul.f32 %v292, %v321
        %v329 = vmul.f32 %v296, %v320
        %v330 = vmul.f32 %v300, %v322
        %v331 = vld [vmem:[%s236] sm:$0xf]
        %v333 = vlaneseq
        %v334 = vshrl.u32 %v333, 7
        %v335 = vsub.s32 0, %v334
        %v336 = vrot.slane %v331, %v335
        %v337 = vlaneseq
        %v338 = vshrl.u32 %v337, 7
        %v339 = vsub.s32 1, %v338
        %v340 = vrot.slane %v331, %v339
        %v341 = vlaneseq
        %v342 = vshrl.u32 %v341, 7
        %v343 = vsub.s32 2, %v342
        %v344 = vrot.slane %v331, %v343
        %v345 = vlaneseq
        %v346 = vshrl.u32 %v345, 7
        %v347 = vsub.s32 3, %v346
        %v348 = vrot.slane %v331, %v347
        %v353 = vadd.f32 %v327, %v336
        %v354 = vadd.f32 %v328, %v340
        %v355 = vadd.f32 %v329, %v344
        %v356 = vadd.f32 %v330, %v348
        %v361 = vcombine.low %v353, %v354
        %v362 = vcombine.low %v355, %v356
        %v364 = vunpack.c.l.s4 1983009808
        %v365 = vunpack.c.0.s8 %v364
        %v366 = vlaneseq
        %v367 = vshrl.u32 %v366, 7
        %v368 = vsub.s32 %v365, %v367
        %v369 = vrot.slane %v361, %v368
        %v371 = vunpack.c.l.s4 1983009808
        %v372 = vunpack.c.0.s8 %v371
        %v373 = vlaneseq
        %v374 = vshrl.u32 %v373, 7
        %v375 = vsub.s32 %v372, %v374
        %v376 = vrot.slane %v362, %v375
        %v377 = vcombine.low %v369, %v376
        %379 = vst [vmem:[%s277] sm:$0xff] %v377
        %s380 = sand.u32 %s125, 1
        %s381 = scalar_lea.sflag [#allocation4], %s380
        %s382 = sand.u32 %s125, 1
        %s383 = smul.addr %s382, 8
        %s384 = scalar_lea.vmem [#allocation8], %s383
        // Predicated region
        $region45: #{tpu_custom_call.1} parent=31 // pred_check
          %p385 = pneg %p135
        $region46: #{tpu_custom_call.1} parent=31 // pred_check_branch
          %387 = sbr.rel (%p385) target = $region48
        $region47: #{tpu_custom_call.1} parent=31 // pred_region
          %s388 = smul.u32 4, %s28
          %s390 = ssub.s32 128, 128
          %391 = vsyncadd %s381, %s390
          %s392 = smul.addr %s27, 8
          %s393 = sadd.s32 %s388, %s392
          %s394 = smul.addr %s393, 32
          %s395 = scalar_lea.hbm %s3, %s394
          %s397 = sshll.u32 %s384, 4
          %s398 = int_to_ptr.vmem [resolvable:$true] %s397
          %400 = dma.vmem_to_hbm [thread:$0]  %s398, 128, %s395, %s381
        $region48: #{tpu_custom_call.1} parent=31 // pred_fallthru
          _
      $region32: #{tpu_custom_call.1} parent=5 // pred_fallthru
        _
      %p401 = scmp.le.s32.totalorder 2, %s18
      // Predicated region
      $region49: #{tpu_custom_call.1} parent=5 // pred_check
        %p402 = pneg %p401
      $region50: #{tpu_custom_call.1} parent=5 // pred_check_branch
        %404 = sbr.rel (%p402) target = $region52
      $region51: #{tpu_custom_call.1} parent=5 // pred_region
        %s405 = ssub.s32 %s18, 2
        // Predicated region
        $region53: #{tpu_custom_call.1} parent=51 // pred_check
          %p406 = pneg %p141
        $region54: #{tpu_custom_call.1} parent=51 // pred_check_branch
          %408 = sbr.rel (%p406) target = $region56
        $region55: #{tpu_custom_call.1} parent=51 // pred_region
          %s409 = sand.u32 %s126, 1
          %s410 = scalar_lea.sflag [#allocation4], %s409
          %s411 = sand.u32 %s126, 1
          %s412 = smul.addr %s411, 8
          %s413 = scalar_lea.vmem [#allocation8], %s412
          %414 = dma.done %s410, 128
        $region56: #{tpu_custom_call.1} parent=51 // pred_fallthru
          _
      $region52: #{tpu_custom_call.1} parent=5 // pred_fallthru
        _
    $region6: #{tpu_custom_call.1} parent=1 // loop_footer
      %s22 = sadd.s32 1, %s18
    $region7: #{tpu_custom_call.1} parent=1 // loop_footer_branch
      %17 = sbr.rel target = $region3
    $region8: #{tpu_custom_call.1} parent=1 // loop_exit
      _
    %415 = vsyncpa [#allocation3], 1
    %s416 = scalar_lea.sflag [#allocation3], 1
    %417 = vsyncpa %s416, 1
    %418 = vsyncpa [#allocation6], 1
    %s419 = scalar_lea.sflag [#allocation6], 1
    %420 = vsyncpa %s419, 1
    %421 = vsyncpa [#allocation4], 1
    %s422 = scalar_lea.sflag [#allocation4], 1
    %423 = vsyncpa %s422, 1

</llo_original>
